<compile_context>
chip_gen: v5e
topology: v5e:2x2
jax: 0.10.0
libtpu: 0.0.40
codegen_flags: <defaults>
</compile_context>

<pallas_src>
import functools
import math

import jax
import jax.numpy as jnp
from jax.experimental import pallas as pl
from jax.experimental.pallas import tpu as pltpu


# ---------------------------------------------------------------------------
# helpers
# ---------------------------------------------------------------------------
def _layernorm(x, w, b, eps=1e-5):
    mu = jnp.mean(x, axis=-1, keepdims=True)
    var = jnp.mean(jnp.square(x - mu), axis=-1, keepdims=True)
    return (x - mu) * jax.lax.rsqrt(var + eps) * w + b


def _full_block(shape):
    """Whole-array VMEM block, identical across all grid steps."""
    zeros = (0,) * len(shape)
    return pl.BlockSpec(shape, lambda b: zeros)


# ---------------------------------------------------------------------------
# Kernel 1: one post-norm TransformerEncoderLayer, gridded over batch
# ---------------------------------------------------------------------------
def encoder_layer_kernel(x_ref, mask_ref, inw_ref, inb_ref, ow_ref, ob_ref,
                         w1_ref, b1_ref, w2_ref, b2_ref,
                         ln1w_ref, ln1b_ref, ln2w_ref, ln2b_ref,
                         o_ref, *, nhead):
    S, D = x_ref.shape[1], x_ref.shape[2]
    hd = D // nhead
    att_scale = 1.0 / math.sqrt(hd)

    x = x_ref[0]                                    # [S, D] f32 (this batch)
    mask = mask_ref[...]                            # [S, S] additive f32

    # ---- fused QKV projection: one [S, D] @ [D, 3D] matmul (bf16 -> f32) ----
    qkv = jnp.dot(x.astype(jnp.bfloat16), inw_ref[...],
                  preferred_element_type=jnp.float32) + inb_ref[...]   # [S, 3D]

    # ---- stack heads into a leading batch dim: [nhead, S, hd] ----
    # TODO(synk): at real head counts replace this slice+concat split with a
    # single reshape/einshape view of qkv (one relayout instead of nhead
    # slices, no static unroll over heads).
    def heads(col0):
        return jnp.concatenate(
            [qkv[None, :, col0 + h * hd: col0 + (h + 1) * hd]
             for h in range(nhead)], axis=0)

    q = heads(0).astype(jnp.bfloat16)
    k = heads(D).astype(jnp.bfloat16)
    v = heads(2 * D).astype(jnp.bfloat16)

    # ---- batched scores + softmax over all heads at once ----
    s = jnp.einsum('hqd,hkd->hqk', q, k,
                   preferred_element_type=jnp.float32)        # [nhead, S, S]
    s = s * att_scale + mask[None, :, :]
    m = jnp.max(s, axis=-1, keepdims=True)
    p = jnp.exp(s - m)
    p = p * pl.reciprocal(jnp.sum(p, axis=-1, keepdims=True), approx=True)

    ctx = jnp.einsum('hqk,hkd->hqd', p.astype(jnp.bfloat16), v,
                     preferred_element_type=jnp.float32)      # [nhead, S, hd]

    # ---- fold heads back; ONE output-projection matmul (no per-head fold) ---
    ctx2d = jnp.concatenate([ctx[h] for h in range(nhead)], axis=-1)  # [S, D]
    attn = jnp.dot(ctx2d.astype(jnp.bfloat16), ow_ref[...],
                   preferred_element_type=jnp.float32) + ob_ref[...]

    # ---- residual + LayerNorm1 ----
    y = _layernorm(x + attn, ln1w_ref[...], ln1b_ref[...])

    # ---- feed-forward (relu) + residual + LayerNorm2 ----
    mid = jnp.maximum(
        jnp.dot(y.astype(jnp.bfloat16), w1_ref[...],
                preferred_element_type=jnp.float32) + b1_ref[...], 0.0)
    ff = jnp.dot(mid.astype(jnp.bfloat16), w2_ref[...],
                 preferred_element_type=jnp.float32) + b2_ref[...]
    z = _layernorm(y + ff, ln2w_ref[...], ln2b_ref[...])

    o_ref[0] = z.astype(o_ref.dtype)


def encoder_layer(x, src_mask, lp, *, nhead):
    # x: [B, S, D] f32
    B, S, D = x.shape
    kern = functools.partial(encoder_layer_kernel, nhead=nhead)
    args = (x, src_mask,
            lp["in_w_t"], lp["in_b"], lp["out_w_t"], lp["out_b"],
            lp["w1_t"], lp["b1"], lp["w2_t"], lp["b2"],
            lp["ln1_w"], lp["ln1_b"], lp["ln2_w"], lp["ln2_b"])
    in_specs = [pl.BlockSpec((1, S, D), lambda b: (b, 0, 0))]
    in_specs += [_full_block(a.shape) for a in args[1:]]
    # TODO(synk): for non-toy S / d_model / d_hid, tile the KV axis
    # flash-attention style and grid the FFN over row / K tiles with a
    # pl.when-gated f32 VMEM accumulator so the layer fits v7x's 64 MiB VMEM
    # with double-buffered weight DMA.
    # TODO(synk): on bandwidth-bound v5e, emit inter-layer activations in
    # bf16 (keep LayerNorm statistics in f32 inside the kernel).
    return pl.pallas_call(
        kern,
        out_shape=jax.ShapeDtypeStruct((B, S, D), jnp.float32),
        grid=(B,),
        in_specs=in_specs,
        out_specs=pl.BlockSpec((1, S, D), lambda b: (b, 0, 0)),
        compiler_params=pltpu.CompilerParams(
            dimension_semantics=("parallel",),
            vmem_limit_bytes=32 * 1024 * 1024),
    )(*args)


# ---------------------------------------------------------------------------
# Kernel 2: final decoder Linear(d_model -> ntoken_padded), gridded over rows
# ---------------------------------------------------------------------------
def decoder_kernel(x_ref, w_ref, b_ref, o_ref):
    o_ref[...] = (jnp.dot(x_ref[...].astype(jnp.bfloat16), w_ref[...],
                          preferred_element_type=jnp.float32)
                  + b_ref[...]).astype(o_ref.dtype)


def decoder(x, w_t_pad, b_pad):
    N, D = x.shape
    NP = w_t_pad.shape[1]                 # padded (multiple of 128) vocab
    # Row tile: largest MXU-friendly tile (<=256) that divides N.
    TM = N
    for cand in (256, 128, 64, 32, 16, 8):
        if N >= cand and N % cand == 0:
            TM = cand
            break
    # TODO(synk): for a real vocab, add a second grid axis over NP (with
    # pipeline_mode=pl.Buffered(2)) instead of holding the full (D, NP) slab.
    return pl.pallas_call(
        decoder_kernel,
        out_shape=jax.ShapeDtypeStruct((N, NP), jnp.float32),
        grid=(N // TM,),
        in_specs=[pl.BlockSpec((TM, D), lambda i: (i, 0)),
                  pl.BlockSpec((D, NP), lambda i: (0, 0)),
                  pl.BlockSpec((1, NP), lambda i: (0, 0))],
        out_specs=pl.BlockSpec((TM, NP), lambda i: (i, 0)),
        compiler_params=pltpu.CompilerParams(
            dimension_semantics=("parallel",),
            vmem_limit_bytes=32 * 1024 * 1024),
    )(x, w_t_pad, b_pad)


# ---------------------------------------------------------------------------
# Parameter construction (deterministic, pre-transposed, bf16 weights)
# ---------------------------------------------------------------------------
def make_params(key, *, ntoken, d_model, nhead, d_hid, nlayers, max_len):
    assert d_model % nhead == 0
    keys = iter(jax.random.split(key, 4 + 4 * nlayers))
    initrange = 0.1
    ntoken_pad = ((ntoken + 127) // 128) * 128

    dec_w_t = jax.random.uniform(next(keys), (d_model, ntoken),
                                 jnp.float32, -initrange, initrange)
    params = {
        "ntoken": ntoken,
        "emb_w": jax.random.uniform(next(keys), (ntoken, d_model),
                                    jnp.float32, -initrange, initrange),
        # vocab dim padded to a multiple of 128 for lane-dense decoder stores;
        # matmul weights stored pre-transposed ([K, N]) and pre-cast to bf16.
        "dec_w_t": jnp.pad(dec_w_t, ((0, 0), (0, ntoken_pad - ntoken))
                           ).astype(jnp.bfloat16),
        "dec_b": jnp.zeros((1, ntoken_pad), jnp.float32),
        "layers": [],
    }

    # sinusoidal positional encoding table [max_len, d_model]
    position = jnp.arange(max_len, dtype=jnp.float32)[:, None]
    div_term = jnp.exp(jnp.arange(0, d_model, 2, dtype=jnp.float32)
                       * (-math.log(10000.0) / d_model))
    pe = jnp.stack([jnp.sin(position * div_term),
                    jnp.cos(position * div_term)], axis=-1)
    params["pe"] = pe.reshape(max_len, d_model)

    def rnd(shape):
        return (0.05 * jax.random.normal(next(keys), shape, jnp.float32)
                ).astype(jnp.bfloat16)

    for _ in range(nlayers):
        params["layers"].append({
            "in_w_t": rnd((d_model, 3 * d_model)),
            "in_b": jnp.zeros((1, 3 * d_model), jnp.float32),
            "out_w_t": rnd((d_model, d_model)),
            "out_b": jnp.zeros((1, d_model), jnp.float32),
            "w1_t": rnd((d_model, d_hid)),
            "b1": jnp.zeros((1, d_hid), jnp.float32),
            "w2_t": rnd((d_hid, d_model)),
            "b2": jnp.zeros((1, d_model), jnp.float32),
            "ln1_w": jnp.ones((1, d_model), jnp.float32),
            "ln1_b": jnp.zeros((1, d_model), jnp.float32),
            "ln2_w": jnp.ones((1, d_model), jnp.float32),
            "ln2_b": jnp.zeros((1, d_model), jnp.float32),
        })
    return params


# ---------------------------------------------------------------------------
# Full forward pass
# ---------------------------------------------------------------------------
def transformer_forward(src, src_mask, params, *, nhead):
    # src: [S, B] int32 tokens ; src_mask: [S, S] additive float mask
    S, B = src.shape
    D = params["emb_w"].shape[1]
    ntoken = params["ntoken"]

    # Embedding gather + sqrt(d_model) scale + positional encoding are glue
    # (XLA fuses them with the gather); dropout is identity in eval mode.
    x = jnp.take(params["emb_w"], src.T, axis=0) * math.sqrt(D)   # [B, S, D]
    x = x + params["pe"][:S][None, :, :]

    for lp in params["layers"]:
        x = encoder_layer(x, src_mask, lp, nhead=nhead)           # [B, S, D]

    logits = decoder(x.reshape(B * S, D), params["dec_w_t"], params["dec_b"])
    logits = logits[:, :ntoken].reshape(B, S, ntoken)
    return jnp.transpose(logits, (1, 0, 2))                       # [S, B, ntoken]


# ---------------------------------------------------------------------------
if __name__ == "__main__":
    # small shapes consistent with the module's forward
    ntoken, d_model, nhead, d_hid, nlayers = 50, 32, 2, 200, 2
    S, B = 8, 2

    key = jax.random.PRNGKey(0)
    k_tok, k_par = jax.random.split(key)

    params = make_params(k_par, ntoken=ntoken, d_model=d_model, nhead=nhead,
                         d_hid=d_hid, nlayers=nlayers, max_len=64)

    src = jax.random.randint(k_tok, (S, B), 0, ntoken, dtype=jnp.int32)
    # causal additive mask (finite large-negative instead of -inf for
    # numerical safety; identical softmax semantics for causal masking)
    src_mask = jnp.where(jnp.triu(jnp.ones((S, S), jnp.bool_), k=1),
                         jnp.float32(-1e9), jnp.float32(0.0))

    out = transformer_forward(src, src_mask, params, nhead=nhead)
    out = jax.block_until_ready(out)

    assert out.shape == (S, B, ntoken), out.shape
    assert bool(jnp.all(jnp.isfinite(out)))
    print("KERNEL_OK")
</pallas_src>

<mosaic_0001>
module attributes {stable_mosaic.version = 11 : i64} {
  func.func @encoder_layer_kernel(%arg0: i32, %arg1: memref<1x8x32xf32, #tpu.memory_space<vmem>>, %arg2: memref<8x8xf32, #tpu.memory_space<vmem>>, %arg3: memref<32x96xbf16, #tpu.memory_space<vmem>>, %arg4: memref<1x96xf32, #tpu.memory_space<vmem>>, %arg5: memref<32x32xbf16, #tpu.memory_space<vmem>>, %arg6: memref<1x32xf32, #tpu.memory_space<vmem>>, %arg7: memref<32x200xbf16, #tpu.memory_space<vmem>>, %arg8: memref<1x200xf32, #tpu.memory_space<vmem>>, %arg9: memref<200x32xbf16, #tpu.memory_space<vmem>>, %arg10: memref<1x32xf32, #tpu.memory_space<vmem>>, %arg11: memref<1x32xf32, #tpu.memory_space<vmem>>, %arg12: memref<1x32xf32, #tpu.memory_space<vmem>>, %arg13: memref<1x32xf32, #tpu.memory_space<vmem>>, %arg14: memref<1x32xf32, #tpu.memory_space<vmem>>, %arg15: memref<1x8x32xf32, #tpu.memory_space<vmem>>) attributes {dimension_semantics = [#tpu.dimension_semantics<parallel>], iteration_bounds = array<i64: 2>, scalar_prefetch = 0 : i64, scratch_operands = 0 : i64, tpu.core_type = #tpu.core_type<tc>, window_params = [{transform_indices = @transform_0, window_bounds = array<i64: 1, 8, 32>}, {pipeline_mode = #tpu.pipeline_mode<synchronous>, transform_indices = @transform_1, window_bounds = array<i64: 8, 8>}, {pipeline_mode = #tpu.pipeline_mode<synchronous>, transform_indices = @transform_2, window_bounds = array<i64: 32, 96>}, {pipeline_mode = #tpu.pipeline_mode<synchronous>, transform_indices = @transform_3, window_bounds = array<i64: 1, 96>}, {pipeline_mode = #tpu.pipeline_mode<synchronous>, transform_indices = @transform_4, window_bounds = array<i64: 32, 32>}, {pipeline_mode = #tpu.pipeline_mode<synchronous>, transform_indices = @transform_5, window_bounds = array<i64: 1, 32>}, {pipeline_mode = #tpu.pipeline_mode<synchronous>, transform_indices = @transform_6, window_bounds = array<i64: 32, 200>}, {pipeline_mode = #tpu.pipeline_mode<synchronous>, transform_indices = @transform_7, window_bounds = array<i64: 1, 200>}, {pipeline_mode = #tpu.pipeline_mode<synchronous>, transform_indices = @transform_8, window_bounds = array<i64: 200, 32>}, {pipeline_mode = #tpu.pipeline_mode<synchronous>, transform_indices = @transform_9, window_bounds = array<i64: 1, 32>}, {pipeline_mode = #tpu.pipeline_mode<synchronous>, transform_indices = @transform_10, window_bounds = array<i64: 1, 32>}, {pipeline_mode = #tpu.pipeline_mode<synchronous>, transform_indices = @transform_11, window_bounds = array<i64: 1, 32>}, {pipeline_mode = #tpu.pipeline_mode<synchronous>, transform_indices = @transform_12, window_bounds = array<i64: 1, 32>}, {pipeline_mode = #tpu.pipeline_mode<synchronous>, transform_indices = @transform_13, window_bounds = array<i64: 1, 32>}, {transform_indices = @transform_14, window_bounds = array<i64: 1, 8, 32>}]} {
    %c0 = arith.constant 0 : index
    %c0_0 = arith.constant 0 : index
    %c0_1 = arith.constant 0 : index
    %0 = vector.load %arg1[%c0, %c0_0, %c0_1] : memref<1x8x32xf32, #tpu.memory_space<vmem>>, vector<1x8x32xf32>
    %1 = vector.shape_cast %0 : vector<1x8x32xf32> to vector<8x32xf32>
    %c0_2 = arith.constant 0 : index
    %c0_3 = arith.constant 0 : index
    %2 = vector.load %arg2[%c0_2, %c0_3] : memref<8x8xf32, #tpu.memory_space<vmem>>, vector<8x8xf32>
    %3 = arith.truncf %1 : vector<8x32xf32> to vector<8x32xbf16>
    %c0_4 = arith.constant 0 : index
    %c0_5 = arith.constant 0 : index
    %4 = vector.load %arg3[%c0_4, %c0_5] : memref<32x96xbf16, #tpu.memory_space<vmem>>, vector<32x96xbf16>
    %cst = arith.constant dense<0.000000e+00> : vector<8x96xf32>
    %5 = tpu.matmul %3, %4, %cst {dimension_numbers = #tpu.dot_dimension_numbers<[1], [0], [0], [1], [0, 0, 1, 1], [], []>} : vector<8x32xbf16>, vector<32x96xbf16>, vector<8x96xf32> -> vector<8x96xf32>
    %c0_6 = arith.constant 0 : index
    %c0_7 = arith.constant 0 : index
    %6 = vector.load %arg4[%c0_6, %c0_7] : memref<1x96xf32, #tpu.memory_space<vmem>>, vector<1x96xf32>
    %7 = vector.broadcast %6 : vector<1x96xf32> to vector<8x96xf32>
    %8 = arith.addf %5, %7 : vector<8x96xf32>
    %9 = vector.extract_strided_slice %8 {offsets = [0, 0], sizes = [8, 16], strides = [1, 1]} : vector<8x96xf32> to vector<8x16xf32>
    %10 = vector.shape_cast %9 : vector<8x16xf32> to vector<1x8x16xf32>
    %11 = vector.extract_strided_slice %8 {offsets = [0, 16], sizes = [8, 16], strides = [1, 1]} : vector<8x96xf32> to vector<8x16xf32>
    %12 = vector.shape_cast %11 : vector<8x16xf32> to vector<1x8x16xf32>
    %13 = tpu.concatenate %10, %12 in 0 : vector<1x8x16xf32>, vector<1x8x16xf32> -> vector<2x8x16xf32>
    %14 = arith.truncf %13 : vector<2x8x16xf32> to vector<2x8x16xbf16>
    %15 = vector.extract_strided_slice %8 {offsets = [0, 32], sizes = [8, 16], strides = [1, 1]} : vector<8x96xf32> to vector<8x16xf32>
    %16 = vector.shape_cast %15 : vector<8x16xf32> to vector<1x8x16xf32>
    %17 = vector.extract_strided_slice %8 {offsets = [0, 48], sizes = [8, 16], strides = [1, 1]} : vector<8x96xf32> to vector<8x16xf32>
    %18 = vector.shape_cast %17 : vector<8x16xf32> to vector<1x8x16xf32>
    %19 = tpu.concatenate %16, %18 in 0 : vector<1x8x16xf32>, vector<1x8x16xf32> -> vector<2x8x16xf32>
    %20 = arith.truncf %19 : vector<2x8x16xf32> to vector<2x8x16xbf16>
    %21 = vector.extract_strided_slice %8 {offsets = [0, 64], sizes = [8, 16], strides = [1, 1]} : vector<8x96xf32> to vector<8x16xf32>
    %22 = vector.shape_cast %21 : vector<8x16xf32> to vector<1x8x16xf32>
    %23 = vector.extract_strided_slice %8 {offsets = [0, 80], sizes = [8, 16], strides = [1, 1]} : vector<8x96xf32> to vector<8x16xf32>
    %24 = vector.shape_cast %23 : vector<8x16xf32> to vector<1x8x16xf32>
    %25 = tpu.concatenate %22, %24 in 0 : vector<1x8x16xf32>, vector<1x8x16xf32> -> vector<2x8x16xf32>
    %26 = arith.truncf %25 : vector<2x8x16xf32> to vector<2x8x16xbf16>
    "tpu.trace_start"() <{level = 10 : i32, message = "hqd,hkd->hqk"}> : () -> ()
    %cst_8 = arith.constant dense<0.000000e+00> : vector<2x8x8xf32>
    %27 = tpu.matmul %14, %20, %cst_8 {dimension_numbers = #tpu.dot_dimension_numbers<[2], [2], [1], [1], [0, 0, 0, 1, 1, 1], [0], [0]>} : vector<2x8x16xbf16>, vector<2x8x16xbf16>, vector<2x8x8xf32> -> vector<2x8x8xf32>
    "tpu.trace_stop"() : () -> ()
    %cst_9 = arith.constant 2.500000e-01 : f32
    %28 = vector.broadcast %cst_9 : f32 to vector<2x8x8xf32>
    %29 = arith.mulf %27, %28 : vector<2x8x8xf32>
    %30 = vector.shape_cast %2 : vector<8x8xf32> to vector<1x8x8xf32>
    %31 = vector.broadcast %30 : vector<1x8x8xf32> to vector<2x8x8xf32>
    %32 = arith.addf %29, %31 : vector<2x8x8xf32>
    %cst_10 = arith.constant dense<0xFF800000> : vector<2x8xf32>
    %33 = vector.multi_reduction <maximumf>, %32, %cst_10 [2] : vector<2x8x8xf32> to vector<2x8xf32>
    %34 = vector.shape_cast %33 : vector<2x8xf32> to vector<2x8x1xf32>
    %35 = vector.broadcast %34 : vector<2x8x1xf32> to vector<2x8x8xf32>
    %36 = arith.subf %32, %35 : vector<2x8x8xf32>
    %37 = math.exp %36 : vector<2x8x8xf32>
    %cst_11 = arith.constant dense<0.000000e+00> : vector<2x8xf32>
    %38 = vector.multi_reduction <add>, %37, %cst_11 [2] : vector<2x8x8xf32> to vector<2x8xf32>
    %39 = vector.shape_cast %38 : vector<2x8xf32> to vector<2x8x1xf32>
    %40 = tpu.reciprocal %39 {approx = true} : vector<2x8x1xf32> -> vector<2x8x1xf32>
    %41 = vector.broadcast %40 : vector<2x8x1xf32> to vector<2x8x8xf32>
    %42 = arith.mulf %37, %41 : vector<2x8x8xf32>
    %43 = arith.truncf %42 : vector<2x8x8xf32> to vector<2x8x8xbf16>
    "tpu.trace_start"() <{level = 10 : i32, message = "hqk,hkd->hqd"}> : () -> ()
    %cst_12 = arith.constant dense<0.000000e+00> : vector<2x8x16xf32>
    %44 = tpu.matmul %43, %26, %cst_12 {dimension_numbers = #tpu.dot_dimension_numbers<[2], [1], [1], [2], [0, 0, 0, 1, 1, 2], [0], [0]>} : vector<2x8x8xbf16>, vector<2x8x16xbf16>, vector<2x8x16xf32> -> vector<2x8x16xf32>
    "tpu.trace_stop"() : () -> ()
    %45 = vector.extract_strided_slice %44 {offsets = [0, 0, 0], sizes = [1, 8, 16], strides = [1, 1, 1]} : vector<2x8x16xf32> to vector<1x8x16xf32>
    %46 = vector.shape_cast %45 : vector<1x8x16xf32> to vector<8x16xf32>
    %47 = vector.extract_strided_slice %44 {offsets = [1, 0, 0], sizes = [1, 8, 16], strides = [1, 1, 1]} : vector<2x8x16xf32> to vector<1x8x16xf32>
    %48 = vector.shape_cast %47 : vector<1x8x16xf32> to vector<8x16xf32>
    %49 = tpu.concatenate %46, %48 in 1 : vector<8x16xf32>, vector<8x16xf32> -> vector<8x32xf32>
    %50 = arith.truncf %49 : vector<8x32xf32> to vector<8x32xbf16>
    %c0_13 = arith.constant 0 : index
    %c0_14 = arith.constant 0 : index
    %51 = vector.load %arg5[%c0_13, %c0_14] : memref<32x32xbf16, #tpu.memory_space<vmem>>, vector<32x32xbf16>
    %cst_15 = arith.constant dense<0.000000e+00> : vector<8x32xf32>
    %52 = tpu.matmul %50, %51, %cst_15 {dimension_numbers = #tpu.dot_dimension_numbers<[1], [0], [0], [1], [0, 0, 1, 1], [], []>} : vector<8x32xbf16>, vector<32x32xbf16>, vector<8x32xf32> -> vector<8x32xf32>
    %c0_16 = arith.constant 0 : index
    %c0_17 = arith.constant 0 : index
    %53 = vector.load %arg6[%c0_16, %c0_17] : memref<1x32xf32, #tpu.memory_space<vmem>>, vector<1x32xf32>
    %54 = vector.broadcast %53 : vector<1x32xf32> to vector<8x32xf32>
    %55 = arith.addf %52, %54 : vector<8x32xf32>
    %56 = arith.addf %1, %55 : vector<8x32xf32>
    %c0_18 = arith.constant 0 : index
    %c0_19 = arith.constant 0 : index
    %57 = vector.load %arg11[%c0_18, %c0_19] : memref<1x32xf32, #tpu.memory_space<vmem>>, vector<1x32xf32>
    %c0_20 = arith.constant 0 : index
    %c0_21 = arith.constant 0 : index
    %58 = vector.load %arg12[%c0_20, %c0_21] : memref<1x32xf32, #tpu.memory_space<vmem>>, vector<1x32xf32>
    %cst_22 = arith.constant dense<0.000000e+00> : vector<8xf32>
    %59 = vector.multi_reduction <add>, %56, %cst_22 [1] : vector<8x32xf32> to vector<8xf32>
    %60 = vector.shape_cast %59 : vector<8xf32> to vector<8x1xf32>
    %cst_23 = arith.constant 3.200000e+01 : f32
    %61 = vector.broadcast %cst_23 : f32 to vector<8x1xf32>
    %62 = arith.divf %60, %61 : vector<8x1xf32>
    %63 = vector.broadcast %62 : vector<8x1xf32> to vector<8x32xf32>
    %64 = arith.subf %56, %63 : vector<8x32xf32>
    %65 = arith.mulf %64, %64 : vector<8x32xf32>
    %cst_24 = arith.constant dense<0.000000e+00> : vector<8xf32>
    %66 = vector.multi_reduction <add>, %65, %cst_24 [1] : vector<8x32xf32> to vector<8xf32>
    %67 = vector.shape_cast %66 : vector<8xf32> to vector<8x1xf32>
    %cst_25 = arith.constant 3.200000e+01 : f32
    %68 = vector.broadcast %cst_25 : f32 to vector<8x1xf32>
    %69 = arith.divf %67, %68 : vector<8x1xf32>
    %70 = vector.broadcast %62 : vector<8x1xf32> to vector<8x32xf32>
    %71 = arith.subf %56, %70 : vector<8x32xf32>
    %cst_26 = arith.constant 9.99999974E-6 : f32
    %72 = vector.broadcast %cst_26 : f32 to vector<8x1xf32>
    %73 = arith.addf %69, %72 : vector<8x1xf32>
    %74 = math.rsqrt %73 : vector<8x1xf32>
    %75 = vector.broadcast %74 : vector<8x1xf32> to vector<8x32xf32>
    %76 = arith.mulf %71, %75 : vector<8x32xf32>
    %77 = vector.broadcast %57 : vector<1x32xf32> to vector<8x32xf32>
    %78 = arith.mulf %76, %77 : vector<8x32xf32>
    %79 = vector.broadcast %58 : vector<1x32xf32> to vector<8x32xf32>
    %80 = arith.addf %78, %79 : vector<8x32xf32>
    %81 = arith.truncf %80 : vector<8x32xf32> to vector<8x32xbf16>
    %c0_27 = arith.constant 0 : index
    %c0_28 = arith.constant 0 : index
    %82 = vector.load %arg7[%c0_27, %c0_28] : memref<32x200xbf16, #tpu.memory_space<vmem>>, vector<32x200xbf16>
    %cst_29 = arith.constant dense<0.000000e+00> : vector<8x200xf32>
    %83 = tpu.matmul %81, %82, %cst_29 {dimension_numbers = #tpu.dot_dimension_numbers<[1], [0], [0], [1], [0, 0, 1, 1], [], []>} : vector<8x32xbf16>, vector<32x200xbf16>, vector<8x200xf32> -> vector<8x200xf32>
    %c0_30 = arith.constant 0 : index
    %c0_31 = arith.constant 0 : index
    %84 = vector.load %arg8[%c0_30, %c0_31] : memref<1x200xf32, #tpu.memory_space<vmem>>, vector<1x200xf32>
    %85 = vector.broadcast %84 : vector<1x200xf32> to vector<8x200xf32>
    %86 = arith.addf %83, %85 : vector<8x200xf32>
    %cst_32 = arith.constant 0.000000e+00 : f32
    %87 = vector.broadcast %cst_32 : f32 to vector<8x200xf32>
    %88 = arith.maximumf %86, %87 : vector<8x200xf32>
    %89 = arith.truncf %88 : vector<8x200xf32> to vector<8x200xbf16>
    %c0_33 = arith.constant 0 : index
    %c0_34 = arith.constant 0 : index
    %90 = vector.load %arg9[%c0_33, %c0_34] : memref<200x32xbf16, #tpu.memory_space<vmem>>, vector<200x32xbf16>
    %cst_35 = arith.constant dense<0.000000e+00> : vector<8x32xf32>
    %91 = tpu.matmul %89, %90, %cst_35 {dimension_numbers = #tpu.dot_dimension_numbers<[1], [0], [0], [1], [0, 0, 1, 1], [], []>} : vector<8x200xbf16>, vector<200x32xbf16>, vector<8x32xf32> -> vector<8x32xf32>
    %c0_36 = arith.constant 0 : index
    %c0_37 = arith.constant 0 : index
    %92 = vector.load %arg10[%c0_36, %c0_37] : memref<1x32xf32, #tpu.memory_space<vmem>>, vector<1x32xf32>
    %93 = vector.broadcast %92 : vector<1x32xf32> to vector<8x32xf32>
    %94 = arith.addf %91, %93 : vector<8x32xf32>
    %95 = arith.addf %80, %94 : vector<8x32xf32>
    %c0_38 = arith.constant 0 : index
    %c0_39 = arith.constant 0 : index
    %96 = vector.load %arg13[%c0_38, %c0_39] : memref<1x32xf32, #tpu.memory_space<vmem>>, vector<1x32xf32>
    %c0_40 = arith.constant 0 : index
    %c0_41 = arith.constant 0 : index
    %97 = vector.load %arg14[%c0_40, %c0_41] : memref<1x32xf32, #tpu.memory_space<vmem>>, vector<1x32xf32>
    %cst_42 = arith.constant dense<0.000000e+00> : vector<8xf32>
    %98 = vector.multi_reduction <add>, %95, %cst_42 [1] : vector<8x32xf32> to vector<8xf32>
    %99 = vector.shape_cast %98 : vector<8xf32> to vector<8x1xf32>
    %cst_43 = arith.constant 3.200000e+01 : f32
    %100 = vector.broadcast %cst_43 : f32 to vector<8x1xf32>
    %101 = arith.divf %99, %100 : vector<8x1xf32>
    %102 = vector.broadcast %101 : vector<8x1xf32> to vector<8x32xf32>
    %103 = arith.subf %95, %102 : vector<8x32xf32>
    %104 = arith.mulf %103, %103 : vector<8x32xf32>
    %cst_44 = arith.constant dense<0.000000e+00> : vector<8xf32>
    %105 = vector.multi_reduction <add>, %104, %cst_44 [1] : vector<8x32xf32> to vector<8xf32>
    %106 = vector.shape_cast %105 : vector<8xf32> to vector<8x1xf32>
    %cst_45 = arith.constant 3.200000e+01 : f32
    %107 = vector.broadcast %cst_45 : f32 to vector<8x1xf32>
    %108 = arith.divf %106, %107 : vector<8x1xf32>
    %109 = vector.broadcast %101 : vector<8x1xf32> to vector<8x32xf32>
    %110 = arith.subf %95, %109 : vector<8x32xf32>
    %cst_46 = arith.constant 9.99999974E-6 : f32
    %111 = vector.broadcast %cst_46 : f32 to vector<8x1xf32>
    %112 = arith.addf %108, %111 : vector<8x1xf32>
    %113 = math.rsqrt %112 : vector<8x1xf32>
    %114 = vector.broadcast %113 : vector<8x1xf32> to vector<8x32xf32>
    %115 = arith.mulf %110, %114 : vector<8x32xf32>
    %116 = vector.broadcast %96 : vector<1x32xf32> to vector<8x32xf32>
    %117 = arith.mulf %115, %116 : vector<8x32xf32>
    %118 = vector.broadcast %97 : vector<1x32xf32> to vector<8x32xf32>
    %119 = arith.addf %117, %118 : vector<8x32xf32>
    %c0_47 = arith.constant 0 : index
    %c0_48 = arith.constant 0 : index
    %c0_49 = arith.constant 0 : index
    %120 = vector.load %arg15[%c0_47, %c0_48, %c0_49] : memref<1x8x32xf32, #tpu.memory_space<vmem>>, vector<1x8x32xf32>
    %121 = vector.shape_cast %120 : vector<1x8x32xf32> to vector<8x32xf32>
    %122 = vector.shape_cast %119 : vector<8x32xf32> to vector<1x8x32xf32>
    tpu.vector_store %arg15[%c0_47, %c0_48, %c0_49], %122 {strides = array<i32>} : memref<1x8x32xf32, #tpu.memory_space<vmem>>, vector<1x8x32xf32>,
    return
  }
  func.func @transform_0(%arg0: i32) -> (i32, i32, i32) {
    %c0_i32 = arith.constant 0 : i32
    %c0_i32_0 = arith.constant 0 : i32
    %c0_i32_1 = arith.constant 0 : i32
    return %arg0, %c0_i32, %c0_i32_0 : i32, i32, i32
  }
  func.func @transform_1(%arg0: i32) -> (i32, i32) {
    %c0_i32 = arith.constant 0 : i32
    %c0_i32_0 = arith.constant 0 : i32
    %c0_i32_1 = arith.constant 0 : i32
    return %c0_i32, %c0_i32_0 : i32, i32
  }
  func.func @transform_2(%arg0: i32) -> (i32, i32) {
    %c0_i32 = arith.constant 0 : i32
    %c0_i32_0 = arith.constant 0 : i32
    %c0_i32_1 = arith.constant 0 : i32
    return %c0_i32, %c0_i32_0 : i32, i32
  }
  func.func @transform_3(%arg0: i32) -> (i32, i32) {
    %c0_i32 = arith.constant 0 : i32
    %c0_i32_0 = arith.constant 0 : i32
    %c0_i32_1 = arith.constant 0 : i32
    return %c0_i32, %c0_i32_0 : i32, i32
  }
  func.func @transform_4(%arg0: i32) -> (i32, i32) {
    %c0_i32 = arith.constant 0 : i32
    %c0_i32_0 = arith.constant 0 : i32
    %c0_i32_1 = arith.constant 0 : i32
    return %c0_i32, %c0_i32_0 : i32, i32
  }
  func.func @transform_5(%arg0: i32) -> (i32, i32) {
    %c0_i32 = arith.constant 0 : i32
    %c0_i32_0 = arith.constant 0 : i32
    %c0_i32_1 = arith.constant 0 : i32
    return %c0_i32, %c0_i32_0 : i32, i32
  }
  func.func @transform_6(%arg0: i32) -> (i32, i32) {
    %c0_i32 = arith.constant 0 : i32
    %c0_i32_0 = arith.constant 0 : i32
    %c0_i32_1 = arith.constant 0 : i32
    return %c0_i32, %c0_i32_0 : i32, i32
  }
  func.func @transform_7(%arg0: i32) -> (i32, i32) {
    %c0_i32 = arith.constant 0 : i32
    %c0_i32_0 = arith.constant 0 : i32
    %c0_i32_1 = arith.constant 0 : i32
    return %c0_i32, %c0_i32_0 : i32, i32
  }
  func.func @transform_8(%arg0: i32) -> (i32, i32) {
    %c0_i32 = arith.constant 0 : i32
    %c0_i32_0 = arith.constant 0 : i32
    %c0_i32_1 = arith.constant 0 : i32
    return %c0_i32, %c0_i32_0 : i32, i32
  }
  func.func @transform_9(%arg0: i32) -> (i32, i32) {
    %c0_i32 = arith.constant 0 : i32
    %c0_i32_0 = arith.constant 0 : i32
    %c0_i32_1 = arith.constant 0 : i32
    return %c0_i32, %c0_i32_0 : i32, i32
  }
  func.func @transform_10(%arg0: i32) -> (i32, i32) {
    %c0_i32 = arith.constant 0 : i32
    %c0_i32_0 = arith.constant 0 : i32
    %c0_i32_1 = arith.constant 0 : i32
    return %c0_i32, %c0_i32_0 : i32, i32
  }
  func.func @transform_11(%arg0: i32) -> (i32, i32) {
    %c0_i32 = arith.constant 0 : i32
    %c0_i32_0 = arith.constant 0 : i32
    %c0_i32_1 = arith.constant 0 : i32
    return %c0_i32, %c0_i32_0 : i32, i32
  }
  func.func @transform_12(%arg0: i32) -> (i32, i32) {
    %c0_i32 = arith.constant 0 : i32
    %c0_i32_0 = arith.constant 0 : i32
    %c0_i32_1 = arith.constant 0 : i32
    return %c0_i32, %c0_i32_0 : i32, i32
  }
  func.func @transform_13(%arg0: i32) -> (i32, i32) {
    %c0_i32 = arith.constant 0 : i32
    %c0_i32_0 = arith.constant 0 : i32
    %c0_i32_1 = arith.constant 0 : i32
    return %c0_i32, %c0_i32_0 : i32, i32
  }
  func.func @transform_14(%arg0: i32) -> (i32, i32, i32) {
    %c0_i32 = arith.constant 0 : i32
    %c0_i32_0 = arith.constant 0 : i32
    %c0_i32_1 = arith.constant 0 : i32
    return %arg0, %c0_i32, %c0_i32_0 : i32, i32, i32
  }
}

</mosaic_0001>

<llo_original>
// kernel: tpu_custom_call.1
$region0: #{tpu_custom_call.1}
  #allocation0 [shape = 'u32[]', space=smem, size = 0x4, offset = 0x4, fixed_abs, tag = 'smem constant byte address 0x4 - core index']
  #allocation1 [shape = 'u32[72,128]{1,0:T(1,128)}', space=vmem, size = 0x9000, scoped, tag = 'internal scratch']
  %s0 = inlined_call_operand.vmem [shape: f32[2,8,32], index: 0, kind: input, shape index: {}]
  %s1 = inlined_call_operand.vmem [shape: f32[8,8], index: 1, kind: input, shape index: {}]
  %s2 = inlined_call_operand.vmem [shape: bf16[32,96], index: 2, kind: input, shape index: {}]
  %s3 = inlined_call_operand.vmem [shape: f32[1,96], index: 3, kind: input, shape index: {}]
  %s4 = inlined_call_operand.vmem [shape: bf16[32,32], index: 4, kind: input, shape index: {}]
  %s5 = inlined_call_operand.vmem [shape: f32[1,32], index: 5, kind: input, shape index: {}]
  %s6 = inlined_call_operand.vmem [shape: bf16[32,200], index: 6, kind: input, shape index: {}]
  %s7 = inlined_call_operand.vmem [shape: f32[1,200], index: 7, kind: input, shape index: {}]
  %s8 = inlined_call_operand.vmem [shape: bf16[200,32], index: 8, kind: input, shape index: {}]
  %s9 = inlined_call_operand.vmem [shape: f32[1,32], index: 9, kind: input, shape index: {}]
  %s10 = inlined_call_operand.vmem [shape: f32[1,32], index: 10, kind: input, shape index: {}]
  %s11 = inlined_call_operand.vmem [shape: f32[1,32], index: 11, kind: input, shape index: {}]
  %s12 = inlined_call_operand.vmem [shape: f32[1,32], index: 12, kind: input, shape index: {}]
  %s13 = inlined_call_operand.vmem [shape: f32[1,32], index: 13, kind: input, shape index: {}]
  %s14 = inlined_call_operand.hbm [shape: f32[2,8,32], index: 14, kind: output, shape index: {}]
  %s15 = sld [smem:[#allocation0]]
  $region89: #{tpu_custom_call.1} parent=0
    _
  %s17 = ssub.s32 1, %s15
  %s18 = scalar_select 0, %s17, %s15
  $region1: #{tpu_custom_call.1} parent=0
    #allocation2 [shape = 'u8[8192]{0}', space=vmem, size = 0x2000, scoped, tag = 'output window, operand 0']
    #allocation3 [shape = 's32[2]{0}', space=sflag, size = 0x8, scoped, tag = 'scoped memory for tpu_custom_call.1']
    %19 = vsyncpa [#allocation3], 0
    %s20 = scalar_lea.sflag [#allocation3], 1
    %21 = vsyncpa %s20, 0
    loop: start=0, step=1, limit=4
    $region2: #{tpu_custom_call.1} parent=1 // loop_pre_header
      _
    $region3: #{tpu_custom_call.1} parent=1 // loop_header
      %s23 = sphi 0, %s27
      %p24 = scmp.ge.s32.totalorder %s23, 4
      %s33 = sphi 0, %s35
      %s36 = sphi 0, %s33
      %s37 = sphi 0, %s36
      %s53 = sphi 0, %s37
      %s57 = sphi 0, %s57
      %s59 = sphi 0, %s57
      %s60 = sphi 0, %s59
      %s74 = sphi 0, %s60
      %s78 = sphi 0, %s78
      %s80 = sphi 0, %s78
      %s81 = sphi 0, %s80
      %s95 = sphi 0, %s81
      %s99 = sphi 0, %s99
      %s101 = sphi 0, %s99
      %s102 = sphi 0, %s101
      %s116 = sphi 0, %s102
      %s120 = sphi 0, %s120
      %s122 = sphi 0, %s120
      %s123 = sphi 0, %s122
      %s137 = sphi 0, %s123
      %s141 = sphi 0, %s141
      %s143 = sphi 0, %s141
      %s144 = sphi 0, %s143
      %s158 = sphi 0, %s144
      %s162 = sphi 0, %s162
      %s164 = sphi 0, %s162
      %s165 = sphi 0, %s164
      %s179 = sphi 0, %s165
      %s183 = sphi 0, %s183
      %s185 = sphi 0, %s183
      %s186 = sphi 0, %s185
      %s200 = sphi 0, %s186
      %s204 = sphi 0, %s204
      %s206 = sphi 0, %s204
      %s207 = sphi 0, %s206
      %s221 = sphi 0, %s207
      %s225 = sphi 0, %s225
      %s227 = sphi 0, %s225
      %s228 = sphi 0, %s227
      %s242 = sphi 0, %s228
      %s246 = sphi 0, %s246
      %s248 = sphi 0, %s246
      %s249 = sphi 0, %s248
      %s263 = sphi 0, %s249
      %s267 = sphi 0, %s267
      %s269 = sphi 0, %s267
      %s270 = sphi 0, %s269
      %s284 = sphi 0, %s270
      %s288 = sphi 0, %s288
      %s290 = sphi 0, %s288
      %s291 = sphi 0, %s290
      %s305 = sphi 0, %s291
      %s309 = sphi 0, %s309
      %s311 = sphi 0, %s309
      %s312 = sphi 0, %s311
      %s326 = sphi 0, %s312
      %s332 = sphi 0, %s334
      %s335 = sphi 0, %s332
      %s336 = sphi 0, %s335
      %s352 = sphi 0, %s336
    $region4: #{tpu_custom_call.1} parent=1 // loop_header_branch
      %26 = sbr.rel (%p24) target = $region8
    $region5: #{tpu_custom_call.1} parent=1 // loop_body
      %s28 = ssub.s32 %s23, 1
      %s29 = ssub.s32 %s23, 2
      %s30 = sadd.s32 %s23, 1
      %s31 = ssub.s32 %s23, %s30
      %p32 = scmp.eq.s32.totalorder %s31, 0
      %s34 = sadd.s32 %s33, 1
      %s35 = scalar_select %p32, %s33, %s34
      %p38 = pneg %p32
      %p39 = scmp.eq.s32.totalorder %s23, 1
      %p40 = por %p38, %p39
      %p41 = scmp.ne.s32.totalorder %s33, %s36
      %p42 = scmp.eq.s32.totalorder %s23, 0
      %p43 = por %p41, %p42
      %p44 = scmp.ne.s32.totalorder %s33, %s36
      %p45 = scmp.eq.s32.totalorder %s28, 1
      %p46 = por %p44, %p45
      %p47 = scmp.ne.s32.totalorder %s36, %s37
      %p48 = scmp.eq.s32.totalorder %s28, 0
      %p49 = por %p47, %p48
      %p50 = scmp.ne.s32.totalorder %s36, %s37
      %p51 = scmp.eq.s32.totalorder %s29, 1
      %p52 = por %p50, %p51
      %p54 = scmp.ne.s32.totalorder %s37, %s53
      %p55 = scmp.eq.s32.totalorder %s29, 0
      %p56 = por %p54, %p55
      %s58 = sadd.s32 %s57, 1
      %p61 = scmp.eq.s32.totalorder %s23, 1
      %p62 = scmp.ne.s32.totalorder %s57, %s59
      %p63 = scmp.eq.s32.totalorder %s23, 0
      %p64 = por %p62, %p63
      %p65 = scmp.ne.s32.totalorder %s57, %s59
      %p66 = scmp.eq.s32.totalorder %s28, 1
      %p67 = por %p65, %p66
      %p68 = scmp.ne.s32.totalorder %s59, %s60
      %p69 = scmp.eq.s32.totalorder %s28, 0
      %p70 = por %p68, %p69
      %p71 = scmp.ne.s32.totalorder %s59, %s60
      %p72 = scmp.eq.s32.totalorder %s29, 1
      %p73 = por %p71, %p72
      %p75 = scmp.ne.s32.totalorder %s60, %s74
      %p76 = scmp.eq.s32.totalorder %s29, 0
      %p77 = por %p75, %p76
      %s79 = sadd.s32 %s78, 1
      %p82 = scmp.eq.s32.totalorder %s23, 1
      %p83 = scmp.ne.s32.totalorder %s78, %s80
      %p84 = scmp.eq.s32.totalorder %s23, 0
      %p85 = por %p83, %p84
      %p86 = scmp.ne.s32.totalorder %s78, %s80
      %p87 = scmp.eq.s32.totalorder %s28, 1
      %p88 = por %p86, %p87
      %p89 = scmp.ne.s32.totalorder %s80, %s81
      %p90 = scmp.eq.s32.totalorder %s28, 0
      %p91 = por %p89, %p90
      %p92 = scmp.ne.s32.totalorder %s80, %s81
      %p93 = scmp.eq.s32.totalorder %s29, 1
      %p94 = por %p92, %p93
      %p96 = scmp.ne.s32.totalorder %s81, %s95
      %p97 = scmp.eq.s32.totalorder %s29, 0
      %p98 = por %p96, %p97
      %s100 = sadd.s32 %s99, 1
      %p103 = scmp.eq.s32.totalorder %s23, 1
      %p104 = scmp.ne.s32.totalorder %s99, %s101
      %p105 = scmp.eq.s32.totalorder %s23, 0
      %p106 = por %p104, %p105
      %p107 = scmp.ne.s32.totalorder %s99, %s101
      %p108 = scmp.eq.s32.totalorder %s28, 1
      %p109 = por %p107, %p108
      %p110 = scmp.ne.s32.totalorder %s101, %s102
      %p111 = scmp.eq.s32.totalorder %s28, 0
      %p112 = por %p110, %p111
      %p113 = scmp.ne.s32.totalorder %s101, %s102
      %p114 = scmp.eq.s32.totalorder %s29, 1
      %p115 = por %p113, %p114
      %p117 = scmp.ne.s32.totalorder %s102, %s116
      %p118 = scmp.eq.s32.totalorder %s29, 0
      %p119 = por %p117, %p118
      %s121 = sadd.s32 %s120, 1
      %p124 = scmp.eq.s32.totalorder %s23, 1
      %p125 = scmp.ne.s32.totalorder %s120, %s122
      %p126 = scmp.eq.s32.totalorder %s23, 0
      %p127 = por %p125, %p126
      %p128 = scmp.ne.s32.totalorder %s120, %s122
      %p129 = scmp.eq.s32.totalorder %s28, 1
      %p130 = por %p128, %p129
      %p131 = scmp.ne.s32.totalorder %s122, %s123
      %p132 = scmp.eq.s32.totalorder %s28, 0
      %p133 = por %p131, %p132
      %p134 = scmp.ne.s32.totalorder %s122, %s123
      %p135 = scmp.eq.s32.totalorder %s29, 1
      %p136 = por %p134, %p135
      %p138 = scmp.ne.s32.totalorder %s123, %s137
      %p139 = scmp.eq.s32.totalorder %s29, 0
      %p140 = por %p138, %p139
      %s142 = sadd.s32 %s141, 1
      %p145 = scmp.eq.s32.totalorder %s23, 1
      %p146 = scmp.ne.s32.totalorder %s141, %s143
      %p147 = scmp.eq.s32.totalorder %s23, 0
      %p148 = por %p146, %p147
      %p149 = scmp.ne.s32.totalorder %s141, %s143
      %p150 = scmp.eq.s32.totalorder %s28, 1
      %p151 = por %p149, %p150
      %p152 = scmp.ne.s32.totalorder %s143, %s144
      %p153 = scmp.eq.s32.totalorder %s28, 0
      %p154 = por %p152, %p153
      %p155 = scmp.ne.s32.totalorder %s143, %s144
      %p156 = scmp.eq.s32.totalorder %s29, 1
      %p157 = por %p155, %p156
      %p159 = scmp.ne.s32.totalorder %s144, %s158
      %p160 = scmp.eq.s32.totalorder %s29, 0
      %p161 = por %p159, %p160
      %s163 = sadd.s32 %s162, 1
      %p166 = scmp.eq.s32.totalorder %s23, 1
      %p167 = scmp.ne.s32.totalorder %s162, %s164
      %p168 = scmp.eq.s32.totalorder %s23, 0
      %p169 = por %p167, %p168
      %p170 = scmp.ne.s32.totalorder %s162, %s164
      %p171 = scmp.eq.s32.totalorder %s28, 1
      %p172 = por %p170, %p171
      %p173 = scmp.ne.s32.totalorder %s164, %s165
      %p174 = scmp.eq.s32.totalorder %s28, 0
      %p175 = por %p173, %p174
      %p176 = scmp.ne.s32.totalorder %s164, %s165
      %p177 = scmp.eq.s32.totalorder %s29, 1
      %p178 = por %p176, %p177
      %p180 = scmp.ne.s32.totalorder %s165, %s179
      %p181 = scmp.eq.s32.totalorder %s29, 0
      %p182 = por %p180, %p181
      %s184 = sadd.s32 %s183, 1
      %p187 = scmp.eq.s32.totalorder %s23, 1
      %p188 = scmp.ne.s32.totalorder %s183, %s185
      %p189 = scmp.eq.s32.totalorder %s23, 0
      %p190 = por %p188, %p189
      %p191 = scmp.ne.s32.totalorder %s183, %s185
      %p192 = scmp.eq.s32.totalorder %s28, 1
      %p193 = por %p191, %p192
      %p194 = scmp.ne.s32.totalorder %s185, %s186
      %p195 = scmp.eq.s32.totalorder %s28, 0
      %p196 = por %p194, %p195
      %p197 = scmp.ne.s32.totalorder %s185, %s186
      %p198 = scmp.eq.s32.totalorder %s29, 1
      %p199 = por %p197, %p198
      %p201 = scmp.ne.s32.totalorder %s186, %s200
      %p202 = scmp.eq.s32.totalorder %s29, 0
      %p203 = por %p201, %p202
      %s205 = sadd.s32 %s204, 1
      %p208 = scmp.eq.s32.totalorder %s23, 1
      %p209 = scmp.ne.s32.totalorder %s204, %s206
      %p210 = scmp.eq.s32.totalorder %s23, 0
      %p211 = por %p209, %p210
      %p212 = scmp.ne.s32.totalorder %s204, %s206
      %p213 = scmp.eq.s32.totalorder %s28, 1
      %p214 = por %p212, %p213
      %p215 = scmp.ne.s32.totalorder %s206, %s207
      %p216 = scmp.eq.s32.totalorder %s28, 0
      %p217 = por %p215, %p216
      %p218 = scmp.ne.s32.totalorder %s206, %s207
      %p219 = scmp.eq.s32.totalorder %s29, 1
      %p220 = por %p218, %p219
      %p222 = scmp.ne.s32.totalorder %s207, %s221
      %p223 = scmp.eq.s32.totalorder %s29, 0
      %p224 = por %p222, %p223
      %s226 = sadd.s32 %s225, 1
      %p229 = scmp.eq.s32.totalorder %s23, 1
      %p230 = scmp.ne.s32.totalorder %s225, %s227
      %p231 = scmp.eq.s32.totalorder %s23, 0
      %p232 = por %p230, %p231
      %p233 = scmp.ne.s32.totalorder %s225, %s227
      %p234 = scmp.eq.s32.totalorder %s28, 1
      %p235 = por %p233, %p234
      %p236 = scmp.ne.s32.totalorder %s227, %s228
      %p237 = scmp.eq.s32.totalorder %s28, 0
      %p238 = por %p236, %p237
      %p239 = scmp.ne.s32.totalorder %s227, %s228
      %p240 = scmp.eq.s32.totalorder %s29, 1
      %p241 = por %p239, %p240
      %p243 = scmp.ne.s32.totalorder %s228, %s242
      %p244 = scmp.eq.s32.totalorder %s29, 0
      %p245 = por %p243, %p244
      %s247 = sadd.s32 %s246, 1
      %p250 = scmp.eq.s32.totalorder %s23, 1
      %p251 = scmp.ne.s32.totalorder %s246, %s248
      %p252 = scmp.eq.s32.totalorder %s23, 0
      %p253 = por %p251, %p252
      %p254 = scmp.ne.s32.totalorder %s246, %s248
      %p255 = scmp.eq.s32.totalorder %s28, 1
      %p256 = por %p254, %p255
      %p257 = scmp.ne.s32.totalorder %s248, %s249
      %p258 = scmp.eq.s32.totalorder %s28, 0
      %p259 = por %p257, %p258
      %p260 = scmp.ne.s32.totalorder %s248, %s249
      %p261 = scmp.eq.s32.totalorder %s29, 1
      %p262 = por %p260, %p261
      %p264 = scmp.ne.s32.totalorder %s249, %s263
      %p265 = scmp.eq.s32.totalorder %s29, 0
      %p266 = por %p264, %p265
      %s268 = sadd.s32 %s267, 1
      %p271 = scmp.eq.s32.totalorder %s23, 1
      %p272 = scmp.ne.s32.totalorder %s267, %s269
      %p273 = scmp.eq.s32.totalorder %s23, 0
      %p274 = por %p272, %p273
      %p275 = scmp.ne.s32.totalorder %s267, %s269
      %p276 = scmp.eq.s32.totalorder %s28, 1
      %p277 = por %p275, %p276
      %p278 = scmp.ne.s32.totalorder %s269, %s270
      %p279 = scmp.eq.s32.totalorder %s28, 0
      %p280 = por %p278, %p279
      %p281 = scmp.ne.s32.totalorder %s269, %s270
      %p282 = scmp.eq.s32.totalorder %s29, 1
      %p283 = por %p281, %p282
      %p285 = scmp.ne.s32.totalorder %s270, %s284
      %p286 = scmp.eq.s32.totalorder %s29, 0
      %p287 = por %p285, %p286
      %s289 = sadd.s32 %s288, 1
      %p292 = scmp.eq.s32.totalorder %s23, 1
      %p293 = scmp.ne.s32.totalorder %s288, %s290
      %p294 = scmp.eq.s32.totalorder %s23, 0
      %p295 = por %p293, %p294
      %p296 = scmp.ne.s32.totalorder %s288, %s290
      %p297 = scmp.eq.s32.totalorder %s28, 1
      %p298 = por %p296, %p297
      %p299 = scmp.ne.s32.totalorder %s290, %s291
      %p300 = scmp.eq.s32.totalorder %s28, 0
      %p301 = por %p299, %p300
      %p302 = scmp.ne.s32.totalorder %s290, %s291
      %p303 = scmp.eq.s32.totalorder %s29, 1
      %p304 = por %p302, %p303
      %p306 = scmp.ne.s32.totalorder %s291, %s305
      %p307 = scmp.eq.s32.totalorder %s29, 0
      %p308 = por %p306, %p307
      %s310 = sadd.s32 %s309, 1
      %p313 = scmp.eq.s32.totalorder %s23, 1
      %p314 = scmp.ne.s32.totalorder %s309, %s311
      %p315 = scmp.eq.s32.totalorder %s23, 0
      %p316 = por %p314, %p315
      %p317 = scmp.ne.s32.totalorder %s309, %s311
      %p318 = scmp.eq.s32.totalorder %s28, 1
      %p319 = por %p317, %p318
      %p320 = scmp.ne.s32.totalorder %s311, %s312
      %p321 = scmp.eq.s32.totalorder %s28, 0
      %p322 = por %p320, %p321
      %p323 = scmp.ne.s32.totalorder %s311, %s312
      %p324 = scmp.eq.s32.totalorder %s29, 1
      %p325 = por %p323, %p324
      %p327 = scmp.ne.s32.totalorder %s312, %s326
      %p328 = scmp.eq.s32.totalorder %s29, 0
      %p329 = por %p327, %p328
      %s330 = ssub.s32 %s23, %s30
      %p331 = scmp.eq.s32.totalorder %s330, 0
      %s333 = sadd.s32 %s332, 1
      %s334 = scalar_select %p331, %s332, %s333
      %p337 = pneg %p331
      %p338 = scmp.eq.s32.totalorder %s23, 1
      %p339 = por %p337, %p338
      %p340 = scmp.ne.s32.totalorder %s332, %s335
      %p341 = scmp.eq.s32.totalorder %s23, 0
      %p342 = por %p340, %p341
      %p343 = scmp.ne.s32.totalorder %s332, %s335
      %p344 = scmp.eq.s32.totalorder %s28, 1
      %p345 = por %p343, %p344
      %p346 = scmp.ne.s32.totalorder %s335, %s336
      %p347 = scmp.eq.s32.totalorder %s28, 0
      %p348 = por %p346, %p347
      %p349 = scmp.ne.s32.totalorder %s335, %s336
      %p350 = scmp.eq.s32.totalorder %s29, 1
      %p351 = por %p349, %p350
      %p353 = scmp.ne.s32.totalorder %s336, %s352
      %p354 = scmp.eq.s32.totalorder %s29, 0
      %p355 = por %p353, %p354
      %p356 = scmp.le.s32.totalorder 1, %s23
      %p357 = scmp.lt.s32.totalorder %s23, 3
      %p358 = pnand %p356, %p357
      %p359 = pneg %p358
      // Predicated region
      $region9: #{tpu_custom_call.1} parent=5 // pred_check
        _
      $region10: #{tpu_custom_call.1} parent=5 // pred_check_branch
        %361 = sbr.rel (%p358) target = $region12
      $region11: #{tpu_custom_call.1} parent=5 // pred_region
        %s362 = ssub.s32 %s23, 1
        // Predicated region
        $region13: #{tpu_custom_call.1} parent=11 // pred_check
          %p363 = pneg %p70
        $region14: #{tpu_custom_call.1} parent=11 // pred_check_branch
          %365 = sbr.rel (%p363) target = $region16
        $region15: #{tpu_custom_call.1} parent=11 // pred_region
          _
        $region16: #{tpu_custom_call.1} parent=11 // pred_fallthru
          _
        // Predicated region
        $region17: #{tpu_custom_call.1} parent=11 // pred_check
          %p366 = pneg %p91
        $region18: #{tpu_custom_call.1} parent=11 // pred_check_branch
          %368 = sbr.rel (%p366) target = $region20
        $region19: #{tpu_custom_call.1} parent=11 // pred_region
          _
        $region20: #{tpu_custom_call.1} parent=11 // pred_fallthru
          _
        // Predicated region
        $region21: #{tpu_custom_call.1} parent=11 // pred_check
          %p369 = pneg %p112
        $region22: #{tpu_custom_call.1} parent=11 // pred_check_branch
          %371 = sbr.rel (%p369) target = $region24
        $region23: #{tpu_custom_call.1} parent=11 // pred_region
          _
        $region24: #{tpu_custom_call.1} parent=11 // pred_fallthru
          _
        // Predicated region
        $region25: #{tpu_custom_call.1} parent=11 // pred_check
          %p372 = pneg %p133
        $region26: #{tpu_custom_call.1} parent=11 // pred_check_branch
          %374 = sbr.rel (%p372) target = $region28
        $region27: #{tpu_custom_call.1} parent=11 // pred_region
          _
        $region28: #{tpu_custom_call.1} parent=11 // pred_fallthru
          _
        // Predicated region
        $region29: #{tpu_custom_call.1} parent=11 // pred_check
          %p375 = pneg %p154
        $region30: #{tpu_custom_call.1} parent=11 // pred_check_branch
          %377 = sbr.rel (%p375) target = $region32
        $region31: #{tpu_custom_call.1} parent=11 // pred_region
          _
        $region32: #{tpu_custom_call.1} parent=11 // pred_fallthru
          _
        // Predicated region
        $region33: #{tpu_custom_call.1} parent=11 // pred_check
          %p378 = pneg %p175
        $region34: #{tpu_custom_call.1} parent=11 // pred_check_branch
          %380 = sbr.rel (%p378) target = $region36
        $region35: #{tpu_custom_call.1} parent=11 // pred_region
          _
        $region36: #{tpu_custom_call.1} parent=11 // pred_fallthru
          _
        // Predicated region
        $region37: #{tpu_custom_call.1} parent=11 // pred_check
          %p381 = pneg %p196
        $region38: #{tpu_custom_call.1} parent=11 // pred_check_branch
          %383 = sbr.rel (%p381) target = $region40
        $region39: #{tpu_custom_call.1} parent=11 // pred_region
          _
        $region40: #{tpu_custom_call.1} parent=11 // pred_fallthru
          _
        // Predicated region
        $region41: #{tpu_custom_call.1} parent=11 // pred_check
          %p384 = pneg %p217
        $region42: #{tpu_custom_call.1} parent=11 // pred_check_branch
          %386 = sbr.rel (%p384) target = $region44
        $region43: #{tpu_custom_call.1} parent=11 // pred_region
          _
        $region44: #{tpu_custom_call.1} parent=11 // pred_fallthru
          _
        // Predicated region
        $region45: #{tpu_custom_call.1} parent=11 // pred_check
          %p387 = pneg %p238
        $region46: #{tpu_custom_call.1} parent=11 // pred_check_branch
          %389 = sbr.rel (%p387) target = $region48
        $region47: #{tpu_custom_call.1} parent=11 // pred_region
          _
        $region48: #{tpu_custom_call.1} parent=11 // pred_fallthru
          _
        // Predicated region
        $region49: #{tpu_custom_call.1} parent=11 // pred_check
          %p390 = pneg %p259
        $region50: #{tpu_custom_call.1} parent=11 // pred_check_branch
          %392 = sbr.rel (%p390) target = $region52
        $region51: #{tpu_custom_call.1} parent=11 // pred_region
          _
        $region52: #{tpu_custom_call.1} parent=11 // pred_fallthru
          _
        // Predicated region
        $region53: #{tpu_custom_call.1} parent=11 // pred_check
          %p393 = pneg %p280
        $region54: #{tpu_custom_call.1} parent=11 // pred_check_branch
          %395 = sbr.rel (%p393) target = $region56
        $region55: #{tpu_custom_call.1} parent=11 // pred_region
          _
        $region56: #{tpu_custom_call.1} parent=11 // pred_fallthru
          _
        // Predicated region
        $region57: #{tpu_custom_call.1} parent=11 // pred_check
          %p396 = pneg %p301
        $region58: #{tpu_custom_call.1} parent=11 // pred_check_branch
          %398 = sbr.rel (%p396) target = $region60
        $region59: #{tpu_custom_call.1} parent=11 // pred_region
          _
        $region60: #{tpu_custom_call.1} parent=11 // pred_fallthru
          _
        // Predicated region
        $region61: #{tpu_custom_call.1} parent=11 // pred_check
          %p399 = pneg %p322
        $region62: #{tpu_custom_call.1} parent=11 // pred_check_branch
          %401 = sbr.rel (%p399) target = $region64
        $region63: #{tpu_custom_call.1} parent=11 // pred_region
          _
        $region64: #{tpu_custom_call.1} parent=11 // pred_fallthru
          _
      $region12: #{tpu_custom_call.1} parent=5 // pred_fallthru
        _
      %p402 = scmp.lt.s32.totalorder %s23, 2
      // Predicated region
      $region65: #{tpu_custom_call.1} parent=5 // pred_check
        %p403 = pneg %p402
      $region66: #{tpu_custom_call.1} parent=5 // pred_check_branch
        %405 = sbr.rel (%p403) target = $region68
      $region67: #{tpu_custom_call.1} parent=5 // pred_region
        // Predicated region
        $region69: #{tpu_custom_call.1} parent=67 // pred_check
          %p406 = pneg %p43
        $region70: #{tpu_custom_call.1} parent=67 // pred_check_branch
          %408 = sbr.rel (%p406) target = $region72
        $region71: #{tpu_custom_call.1} parent=67 // pred_region
          %p409 = scmp.lt.s32.totalorder %s23, 1
          %s410 = scalar_select %p409, %s23, 1
          %s411 = smul.addr %s410, 8
          %s412 = scalar_lea.vmem %s0, %s411
        $region72: #{tpu_custom_call.1} parent=67 // pred_fallthru
          _
      $region68: #{tpu_custom_call.1} parent=5 // pred_fallthru
        _
      %p413 = scmp.le.s32.totalorder 1, %s23
      %p414 = scmp.lt.s32.totalorder %s23, 3
      %p415 = pnand %p413, %p414
      %p416 = pneg %p415
      // Predicated region
      $region73: #{tpu_custom_call.1} parent=5 // pred_check
        _
      $region74: #{tpu_custom_call.1} parent=5 // pred_check_branch
        %418 = sbr.rel (%p415) target = $region76
      $region75: #{tpu_custom_call.1} parent=5 // pred_region
        %s419 = ssub.s32 %s23, 1
        %p420 = scmp.lt.s32.totalorder %s28, 1
        %s421 = scalar_select %p420, %s28, 1
        %s422 = smul.addr %s421, 8
        %s423 = scalar_lea.vmem %s0, %s422
        %p424 = pneg %p49
        %p425 = pneg %p46
        %p426 = pneg %p70
        %p427 = pneg %p67
        %p428 = pneg %p91
        %p429 = pneg %p88
        %p430 = pneg %p112
        %p431 = pneg %p109
        %p432 = pneg %p133
        %p433 = pneg %p130
        %p434 = pneg %p154
        %p435 = pneg %p151
        %p436 = pneg %p175
        %p437 = pneg %p172
        %p438 = pneg %p196
        %p439 = pneg %p193
        %p440 = pneg %p217
        %p441 = pneg %p214
        %p442 = pneg %p238
        %p443 = pneg %p235
        %p444 = pneg %p259
        %p445 = pneg %p256
        %p446 = pneg %p280
        %p447 = pneg %p277
        %p448 = pneg %p301
        %p449 = pneg %p298
        %p450 = pneg %p322
        %p451 = pneg %p319
        %p452 = pneg %p348
        %p453 = pneg %p345
        %s454 = sand.u32 %s335, 1
        %s455 = scalar_lea.sflag [#allocation3], %s454
        %s456 = sand.u32 %s335, 1
        %s457 = smul.addr %s456, 8
        %s458 = scalar_lea.vmem [#allocation2], %s457
        %p459 = scmp.lt.s32.totalorder %s28, 1
        %s460 = scalar_select %p459, %s28, 1
        %s461 = smul.addr %s460, 8
        %s462 = scalar_lea.vmem %s0, %s461
        %v464 = vld [vmem:[%s462] sm:$0xff]
        %v465 = vld [vmem:[%s1] sm:$0xff]
        %v466 = vpack.c.bf16 %v464, %v464
        %v467 = vld [vmem:[%s2] sm:$0xf]
        %v468 = vld [vmem:[%s2 + $0x4] sm:$0xf]
        %v469 = vld [vmem:[%s2 + $0x8] sm:$0xf]
        %v470 = vld [vmem:[%s2 + $0xc] sm:$0xf]
        %v471 = vld [vmem:[%s3] sm:$0x1]
        %v473 = vperm.slane %v471, 0
        %v479 = vunpack.c.l.b16 %v467
        %v480 = vunpack.c.l.b16 %v468
        %v481 = vunpack.c.l.b16 %v469
        %v482 = vunpack.c.l.b16 %v470
        %v483 = vpack.c.b16 %v480, %v479
        %v484 = vpack.c.b16 %v482, %v481
        %vm487 = vcmask 261120
        %v489 = vsel %vm487, %v466, 0
        %491 = vmatpush.bf16.msra.mxu0 0
        %492 = vmatpush.bf16.msra.mxu0 0
        %493 = vmatpush.bf16.msra.mxu0 0
        %494 = vmatpush.bf16.msra.mxu0 0
        %495 = vmatpush.bf16.msra.mxu0 0
        %496 = vmatpush.bf16.msra.mxu0 0
        %497 = vmatpush.bf16.msra.mxu0 %v484
        %498 = vmatpush.bf16.msra.mxu0 %v483
        %499 = vmatmul.bf16.gmra.mxu0 %v489
        %v500 = vpop.f32.mrf.mxu0
        %v501 = vadd.f32 %v473, %v500
        %v502 = vpop.f32.mrf.mxu0
        %503 = vdwg.mxu0
        %505 = vrot.lane.b32.xlu0 %v501, 112
        %v506 = vpop.permute.xlu0 %505
        %v508 = vpack.c.bf16 %v501, %v501
        %v509 = vpack.c.bf16 %v506, %v506
        %v511 = vunpack.c.l.b16 %v508
        %v512 = vpack.c.b16 %v511, %v511
        %513 = vrot.lane.b32.xlu0 %v512, 96
        %v514 = vpop.permute.xlu0 %513
        %vm515 = vcmask 130048
        %v517 = vsel %vm515, %v508, 0
        %v520 = vsel %vm515, %v514, 0
        %522 = vmatpush.bf16.xpose.msra.mxu0 0
        %523 = vmatpush.bf16.xpose.msra.mxu0 0
        %524 = vmatpush.bf16.xpose.msra.mxu0 0
        %525 = vmatpush.bf16.xpose.msra.mxu0 0
        %526 = vmatpush.bf16.xpose.msra.mxu0 0
        %527 = vmatpush.bf16.xpose.msra.mxu0 0
        %528 = vmatpush.bf16.xpose.msra.mxu0 0
        %529 = vmatpush.bf16.xpose.msra.mxu0 %v520
        %530 = vmatmul.bf16.gmra.mxu0 %v517
        %v531 = vpop.f32.mrf.mxu0
        %v532 = vadd.f32 0.0, %v531
        %v533 = vpop.f32.mrf.mxu0
        %534 = vdwg.mxu0
        %v536 = vunpack.c.l.b16 %v509
        %v537 = vpack.c.b16 %v536, %v536
        %538 = vrot.lane.b32.xlu0 %v537, 96
        %v539 = vpop.permute.xlu0 %538
        %v541 = vsel %vm515, %v509, 0
        %v544 = vsel %vm515, %v539, 0
        %546 = vmatpush.bf16.xpose.msra.mxu0 0
        %547 = vmatpush.bf16.xpose.msra.mxu0 0
        %548 = vmatpush.bf16.xpose.msra.mxu0 0
        %549 = vmatpush.bf16.xpose.msra.mxu0 0
        %550 = vmatpush.bf16.xpose.msra.mxu0 0
        %551 = vmatpush.bf16.xpose.msra.mxu0 0
        %552 = vmatpush.bf16.xpose.msra.mxu0 0
        %553 = vmatpush.bf16.xpose.msra.mxu0 %v544
        %554 = vmatmul.bf16.gmra.mxu0 %v541
        %v555 = vpop.f32.mrf.mxu0
        %v556 = vadd.f32 0.0, %v555
        %v557 = vpop.f32.mrf.mxu0
        %558 = vdwg.mxu0
        %v559 = vmul.f32 %v532, 0.25
        %v560 = vmul.f32 %v556, 0.25
        %v561 = vadd.f32 %v559, %v465
        %v562 = vadd.f32 %v560, %v465
        %vm563 = vcmask 64512
        %v564 = vsel %vm563, %v561, -inf
        %565 = vmax.xlane.f32.xlu0 %v564
        %v566 = vpop.xlane.xlu0 %565
        %v567 = vsel %vm563, %v562, -inf
        %568 = vmax.xlane.f32.xlu0 %v567
        %v569 = vpop.xlane.xlu0 %568
        %v570 = vsub.f32 %v561, %v566
        %v571 = vsub.f32 %v562, %v569
        %v572 = vmul.f32 %v570, 1.442695
        %v573 = vpow.pop %v572
        %v574 = vmul.f32 %v571, 1.442695
        %v575 = vpow.pop %v574
        %v576 = vsel %vm563, %v573, 0.0
        %577 = vadd.xlane.f32.xlu0 %v576
        %v578 = vpop.xlane.xlu0 %577
        %v579 = vsel %vm563, %v575, 0.0
        %580 = vadd.xlane.f32.xlu0 %v579
        %v581 = vpop.xlane.xlu0 %580
        %v582 = vrcp.pop %v578
        %v583 = vrcp.pop %v581
        %v584 = vmul.f32 %v573, %v582
        %v585 = vmul.f32 %v575, %v583
        %v586 = vpack.c.bf16 %v584, %v584
        %v587 = vpack.c.bf16 %v585, %v585
        %588 = vrot.lane.b32.xlu0 %v512, 64
        %v589 = vpop.permute.xlu0 %588
        %v591 = vsel %vm563, %v586, 0
        %vm593 = vcmask 1043456
        %v595 = vsel %vm593, %v589, 0
        %597 = vmatpush.bf16.msra.mxu0 0
        %598 = vmatpush.bf16.msra.mxu0 0
        %599 = vmatpush.bf16.msra.mxu0 0
        %600 = vmatpush.bf16.msra.mxu0 0
        %601 = vmatpush.bf16.msra.mxu0 0
        %602 = vmatpush.bf16.msra.mxu0 0
        %603 = vmatpush.bf16.msra.mxu0 0
        %604 = vmatpush.bf16.msra.mxu0 %v595
        %605 = vmatmul.bf16.gmra.mxu0 %v591
        %v606 = vpop.f32.mrf.mxu0
        %v607 = vadd.f32 0.0, %v606
        %v608 = vpop.f32.mrf.mxu0
        %609 = vdwg.mxu0
        %610 = vrot.lane.b32.xlu0 %v537, 64
        %v611 = vpop.permute.xlu0 %610
        %v613 = vsel %vm563, %v587, 0
        %v616 = vsel %vm593, %v611, 0
        %618 = vmatpush.bf16.msra.mxu0 0
        %619 = vmatpush.bf16.msra.mxu0 0
        %620 = vmatpush.bf16.msra.mxu0 0
        %621 = vmatpush.bf16.msra.mxu0 0
        %622 = vmatpush.bf16.msra.mxu0 0
        %623 = vmatpush.bf16.msra.mxu0 0
        %624 = vmatpush.bf16.msra.mxu0 0
        %625 = vmatpush.bf16.msra.mxu0 %v616
        %626 = vmatmul.bf16.gmra.mxu0 %v613
        %v627 = vpop.f32.mrf.mxu0
        %v628 = vadd.f32 0.0, %v627
        %v629 = vpop.f32.mrf.mxu0
        %630 = vdwg.mxu0
        %632 = vrot.lane.b32.xlu0 %v628, 16
        %v633 = vpop.permute.xlu0 %632
        %v635 = vsel %vm515, %v607, %v633
        %v636 = vpack.c.bf16 %v635, %v635
        %v637 = vld [vmem:[%s4] sm:$0xf]
        %v638 = vld [vmem:[%s4 + $0x4] sm:$0xf]
        %v639 = vld [vmem:[%s4 + $0x8] sm:$0xf]
        %v640 = vld [vmem:[%s4 + $0xc] sm:$0xf]
        %v641 = vld [vmem:[%s5] sm:$0x1]
        %v643 = vperm.slane %v641, 0
        %v649 = vunpack.c.l.b16 %v637
        %v650 = vunpack.c.l.b16 %v638
        %v651 = vunpack.c.l.b16 %v639
        %v652 = vunpack.c.l.b16 %v640
        %v653 = vpack.c.b16 %v650, %v649
        %v654 = vpack.c.b16 %v652, %v651
        %v658 = vsel %vm487, %v636, 0
        %660 = vmatpush.bf16.msra.mxu0 0
        %661 = vmatpush.bf16.msra.mxu0 0
        %662 = vmatpush.bf16.msra.mxu0 0
        %663 = vmatpush.bf16.msra.mxu0 0
        %664 = vmatpush.bf16.msra.mxu0 0
        %665 = vmatpush.bf16.msra.mxu0 0
        %666 = vmatpush.bf16.msra.mxu0 %v654
        %667 = vmatpush.bf16.msra.mxu0 %v653
        %668 = vmatmul.bf16.gmra.mxu0 %v658
        %v669 = vpop.f32.mrf.mxu0
        %v670 = vadd.f32 %v643, %v669
        %v671 = vpop.f32.mrf.mxu0
        %672 = vdwg.mxu0
        %v673 = vadd.f32 %v464, %v670
        %v674 = vld [vmem:[%s10] sm:$0x1]
        %v675 = vld [vmem:[%s11] sm:$0x1]
        %v676 = vsel %vm487, %v673, 0.0
        %677 = vadd.xlane.f32.xlu0 %v676
        %v678 = vpop.xlane.xlu0 %677
        %v679 = vrcp.pop 32.0
        %v680 = vmul.f32 32.0, %v679
        %v681 = vsub.f32 1.0, %v680
        %v682 = vmul.f32 %v679, %v681
        %v683 = vadd.f32 %v679, %v682
        %vm684 = vweird.f32 %v679
        %v685 = vsel %vm684, %v679, %v683
        %v686 = vmul.f32 %v678, %v685
        %v687 = vsub.f32 %v673, %v686
        %v688 = vmul.f32 %v687, %v687
        %v689 = vsel %vm487, %v688, 0.0
        %690 = vadd.xlane.f32.xlu0 %v689
        %v691 = vpop.xlane.xlu0 %690
        %v692 = vmul.f32 %v691, %v685
        %v693 = vadd.f32 %v692, 1e-05
        %v694 = vrsqrt.pop %v693
        %v695 = vmul.f32 %v694, %v693
        %v696 = vmul.f32 %v695, %v694
        %v697 = vmul.f32 0.5, %v696
        %v698 = vsub.f32 1.5, %v697
        %v699 = vmul.f32 %v694, %v698
        %vm700 = vweird.f32 %v693
        %vm701 = vweird.f32 %v694
        %vm702 = vmor %vm700, %vm701
        %v703 = vsel %vm702, %v694, %v699
        %v704 = vmul.f32 %v687, %v703
        %v706 = vperm.slane %v674, 0
        %v708 = vmul.f32 %v704, %v706
        %v710 = vperm.slane %v675, 0
        %v712 = vadd.f32 %v708, %v710
        %v713 = vpack.c.bf16 %v712, %v712
        %v714 = vld [vmem:[%s6] sm:$0xff]
        %v715 = vld [vmem:[%s6 + $0x8] sm:$0xff]
        %v716 = vld [vmem:[%s6 + $0x10] sm:$0xff]
        %v717 = vld [vmem:[%s6 + $0x18] sm:$0xff]
        %v718 = vld [vmem:[%s7] sm:$0x3]
        %v720 = vperm.slane %v718, 0
        %v721 = vperm.slane %v718, 1
        %v728 = vunpack.c.l.b16 %v714
        %v729 = vunpack.c.h.b16 %v714
        %v730 = vunpack.c.l.b16 %v715
        %v731 = vunpack.c.h.b16 %v715
        %v732 = vunpack.c.l.b16 %v716
        %v733 = vunpack.c.h.b16 %v716
        %v734 = vunpack.c.l.b16 %v717
        %v735 = vunpack.c.h.b16 %v717
        %v736 = vpack.c.b16 %v730, %v728
        %v737 = vpack.c.b16 %v731, %v729
        %v738 = vpack.c.b16 %v734, %v732
        %v739 = vpack.c.b16 %v735, %v733
        %v745 = vsel %vm487, %v713, 0
        %747 = vmatpush.bf16.msra.mxu0 0
        %748 = vmatpush.bf16.msra.mxu0 0
        %749 = vmatpush.bf16.msra.mxu0 0
        %750 = vmatpush.bf16.msra.mxu0 0
        %751 = vmatpush.bf16.msra.mxu0 0
        %752 = vmatpush.bf16.msra.mxu0 0
        %753 = vmatpush.bf16.msra.mxu0 %v738
        %754 = vmatpush.bf16.msra.mxu0 %v736
        %755 = vmatmul.bf16.gmra.mxu0 %v745
        %v756 = vpop.f32.mrf.mxu0
        %v757 = vadd.f32 %v720, %v756
        %v758 = vpop.f32.mrf.mxu0
        %759 = vdwg.mxu0
        %760 = vmatpush.bf16.msra.mxu0 0
        %761 = vmatpush.bf16.msra.mxu0 0
        %762 = vmatpush.bf16.msra.mxu0 0
        %763 = vmatpush.bf16.msra.mxu0 0
        %764 = vmatpush.bf16.msra.mxu0 0
        %765 = vmatpush.bf16.msra.mxu0 0
        %766 = vmatpush.bf16.msra.mxu0 %v739
        %767 = vmatpush.bf16.msra.mxu0 %v737
        %768 = vmatmul.bf16.gmra.mxu0 %v745
        %v769 = vpop.f32.mrf.mxu0
        %v770 = vadd.f32 %v721, %v769
        %v771 = vpop.f32.mrf.mxu0
        %772 = vdwg.mxu0
        %v773 = vmax.f32 %v757, 0.0
        %v774 = vmax.f32 %v770, 0.0
        %v775 = vpack.c.bf16 %v773, %v773
        %v776 = vpack.c.bf16 %v774, %v774
        %v777 = vld [vmem:[%s8] sm:$0xf]
        %v778 = vld [vmem:[%s8 + $0x4] sm:$0xf]
        %v779 = vld [vmem:[%s8 + $0x8] sm:$0xf]
        %v780 = vld [vmem:[%s8 + $0xc] sm:$0xf]
        %v781 = vld [vmem:[%s8 + $0x10] sm:$0xf]
        %v782 = vld [vmem:[%s8 + $0x14] sm:$0xf]
        %v783 = vld [vmem:[%s8 + $0x18] sm:$0xf]
        %v784 = vld [vmem:[%s8 + $0x1c] sm:$0xf]
        %v785 = vld [vmem:[%s8 + $0x20] sm:$0xf]
        %v786 = vld [vmem:[%s8 + $0x24] sm:$0xf]
        %v787 = vld [vmem:[%s8 + $0x28] sm:$0xf]
        %v788 = vld [vmem:[%s8 + $0x2c] sm:$0xf]
        %v789 = vld [vmem:[%s8 + $0x30] sm:$0xf]
        %v790 = vld [vmem:[%s8 + $0x34] sm:$0xf]
        %v791 = vld [vmem:[%s8 + $0x38] sm:$0xf]
        %v792 = vld [vmem:[%s8 + $0x3c] sm:$0xf]
        %v793 = vld [vmem:[%s8 + $0x40] sm:$0xf]
        %v794 = vld [vmem:[%s8 + $0x44] sm:$0xf]
        %v795 = vld [vmem:[%s8 + $0x48] sm:$0xf]
        %v796 = vld [vmem:[%s8 + $0x4c] sm:$0xf]
        %v797 = vld [vmem:[%s8 + $0x50] sm:$0xf]
        %v798 = vld [vmem:[%s8 + $0x54] sm:$0xf]
        %v799 = vld [vmem:[%s8 + $0x58] sm:$0xf]
        %v800 = vld [vmem:[%s8 + $0x5c] sm:$0xf]
        %v801 = vld [vmem:[%s8 + $0x60] sm:$0xf]
        %v802 = vld [vmem:[%s9] sm:$0x1]
        %v804 = vperm.slane %v802, 0
        %v831 = vunpack.c.l.b16 %v777
        %v832 = vunpack.c.l.b16 %v778
        %v833 = vunpack.c.l.b16 %v779
        %v834 = vunpack.c.l.b16 %v780
        %v835 = vunpack.c.l.b16 %v781
        %v836 = vunpack.c.l.b16 %v782
        %v837 = vunpack.c.l.b16 %v783
        %v838 = vunpack.c.l.b16 %v784
        %v839 = vunpack.c.l.b16 %v785
        %v840 = vunpack.c.l.b16 %v786
        %v841 = vunpack.c.l.b16 %v787
        %v842 = vunpack.c.l.b16 %v788
        %v843 = vunpack.c.l.b16 %v789
        %v844 = vunpack.c.l.b16 %v790
        %v845 = vunpack.c.l.b16 %v791
        %v846 = vunpack.c.l.b16 %v792
        %v847 = vunpack.c.l.b16 %v793
        %v848 = vunpack.c.l.b16 %v794
        %v849 = vunpack.c.l.b16 %v795
        %v850 = vunpack.c.l.b16 %v796
        %v851 = vunpack.c.l.b16 %v797
        %v852 = vunpack.c.l.b16 %v798
        %v853 = vunpack.c.l.b16 %v799
        %v854 = vunpack.c.l.b16 %v800
        %v855 = vunpack.c.l.b16 %v801
        %v856 = vpack.c.b16 %v832, %v831
        %v857 = vpack.c.b16 %v834, %v833
        %v858 = vpack.c.b16 %v836, %v835
        %v859 = vpack.c.b16 %v838, %v837
        %v860 = vpack.c.b16 %v840, %v839
        %v861 = vpack.c.b16 %v842, %v841
        %v862 = vpack.c.b16 %v844, %v843
        %v863 = vpack.c.b16 %v846, %v845
        %v864 = vpack.c.b16 %v848, %v847
        %v865 = vpack.c.b16 %v850, %v849
        %v866 = vpack.c.b16 %v852, %v851
        %v867 = vpack.c.b16 %v854, %v853
        %v868 = vpack.c.b16 %v855, %v855
        %vm881 = vcmask 588800
        %v883 = vsel %vm881, %v776, 0
        %v886 = vsel %vm593, %v868, 0
        %888 = vmatpush.bf16.msra.mxu0 %v863
        %889 = vmatpush.bf16.msra.mxu0 %v862
        %890 = vmatpush.bf16.msra.mxu0 %v861
        %891 = vmatpush.bf16.msra.mxu0 %v860
        %892 = vmatpush.bf16.msra.mxu0 %v859
        %893 = vmatpush.bf16.msra.mxu0 %v858
        %894 = vmatpush.bf16.msra.mxu0 %v857
        %895 = vmatpush.bf16.msra.mxu0 %v856
        %896 = vmatmul.bf16.gmra.mxu0 %v775
        %v897 = vpop.f32.mrf.mxu0
        %v898 = vadd.f32 %v804, %v897
        %v899 = vpop.f32.mrf.mxu0
        %900 = vdwg.mxu0
        %901 = vmatpush.bf16.msra.mxu0 0
        %902 = vmatpush.bf16.msra.mxu0 0
        %903 = vmatpush.bf16.msra.mxu0 0
        %904 = vmatpush.bf16.msra.mxu0 %v886
        %905 = vmatpush.bf16.msra.mxu0 %v867
        %906 = vmatpush.bf16.msra.mxu0 %v866
        %907 = vmatpush.bf16.msra.mxu0 %v865
        %908 = vmatpush.bf16.msra.mxu0 %v864
        %909 = vmatmul.bf16.gmra.mxu0 %v883
        %v910 = vpop.f32.mrf.mxu0
        %v911 = vadd.f32 %v898, %v910
        %v912 = vpop.f32.mrf.mxu0
        %913 = vdwg.mxu0
        %v914 = vadd.f32 %v712, %v911
        %v915 = vld [vmem:[%s12] sm:$0x1]
        %v916 = vld [vmem:[%s13] sm:$0x1]
        %v917 = vsel %vm487, %v914, 0.0
        %918 = vadd.xlane.f32.xlu0 %v917
        %v919 = vpop.xlane.xlu0 %918
        %v920 = vmul.f32 %v919, %v685
        %v921 = vsub.f32 %v914, %v920
        %v922 = vmul.f32 %v921, %v921
        %v923 = vsel %vm487, %v922, 0.0
        %924 = vadd.xlane.f32.xlu0 %v923
        %v925 = vpop.xlane.xlu0 %924
        %v926 = vmul.f32 %v925, %v685
        %v927 = vadd.f32 %v926, 1e-05
        %v928 = vrsqrt.pop %v927
        %v929 = vmul.f32 %v928, %v927
        %v930 = vmul.f32 %v929, %v928
        %v931 = vmul.f32 0.5, %v930
        %v932 = vsub.f32 1.5, %v931
        %v933 = vmul.f32 %v928, %v932
        %vm934 = vweird.f32 %v927
        %vm935 = vweird.f32 %v928
        %vm936 = vmor %vm934, %vm935
        %v937 = vsel %vm936, %v928, %v933
        %v938 = vmul.f32 %v921, %v937
        %v940 = vperm.slane %v915, 0
        %v942 = vmul.f32 %v938, %v940
        %v944 = vperm.slane %v916, 0
        %v946 = vadd.f32 %v942, %v944
        %947 = vst.msk [vmem:[%s458] sm:$0xff] %vm487, %v946
        %s948 = sand.u32 %s335, 1
        %s949 = scalar_lea.sflag [#allocation3], %s948
        %s950 = sand.u32 %s335, 1
        %s951 = smul.addr %s950, 8
        %s952 = scalar_lea.vmem [#allocation2], %s951
        // Predicated region
        $region77: #{tpu_custom_call.1} parent=75 // pred_check
          %p953 = pneg %p345
        $region78: #{tpu_custom_call.1} parent=75 // pred_check_branch
          %955 = sbr.rel (%p953) target = $region80
        $region79: #{tpu_custom_call.1} parent=75 // pred_region
          %957 = vsyncadd %s949, 0
          %s958 = smul.addr %s28, 8
          %s959 = scalar_lea.hbm %s14, %s958
          %s961 = sshll.u32 %s952, 4
          %s962 = int_to_ptr.vmem [resolvable:$true] %s961
          %s963 = sshll.u32 %s959, 4
          %s964 = int_to_ptr.hbm [resolvable:$true] %s963
          %966 = dma.vmem_to_hbm [thread:$0]  %s962, 128, %s964, %s949
        $region80: #{tpu_custom_call.1} parent=75 // pred_fallthru
          _
      $region76: #{tpu_custom_call.1} parent=5 // pred_fallthru
        _
      %p967 = scmp.le.s32.totalorder 2, %s23
      // Predicated region
      $region81: #{tpu_custom_call.1} parent=5 // pred_check
        %p968 = pneg %p967
      $region82: #{tpu_custom_call.1} parent=5 // pred_check_branch
        %970 = sbr.rel (%p968) target = $region84
      $region83: #{tpu_custom_call.1} parent=5 // pred_region
        %s971 = ssub.s32 %s23, 2
        // Predicated region
        $region85: #{tpu_custom_call.1} parent=83 // pred_check
          %p972 = pneg %p351
        $region86: #{tpu_custom_call.1} parent=83 // pred_check_branch
          %974 = sbr.rel (%p972) target = $region88
        $region87: #{tpu_custom_call.1} parent=83 // pred_region
          %s975 = sand.u32 %s336, 1
          %s976 = scalar_lea.sflag [#allocation3], %s975
          %s977 = sand.u32 %s336, 1
          %s978 = smul.addr %s977, 8
          %s979 = scalar_lea.vmem [#allocation2], %s978
          %981 = dma.done %s976, 128
        $region88: #{tpu_custom_call.1} parent=83 // pred_fallthru
          _
      $region84: #{tpu_custom_call.1} parent=5 // pred_fallthru
        _
    $region6: #{tpu_custom_call.1} parent=1 // loop_footer
      %s27 = sadd.s32 1, %s23
    $region7: #{tpu_custom_call.1} parent=1 // loop_footer_branch
      %22 = sbr.rel target = $region3
    $region8: #{tpu_custom_call.1} parent=1 // loop_exit
      _
    %982 = vsyncpa [#allocation3], 1
    %s983 = scalar_lea.sflag [#allocation3], 1
    %984 = vsyncpa %s983, 1

</llo_original>
